<compile_context>
chip_gen: v7x
topology: tpu7x:2x2x1
jax: 0.10.0
libtpu: 0.0.40
codegen_flags: <defaults>
</compile_context>

<pallas_src>
import functools

import jax
import jax.numpy as jnp
import numpy as np
from jax.experimental import pallas as pl
from jax.experimental.pallas import tpu as pltpu

_LANE = 128
_SUBLANE = 8


# ----------------------------------------------------------------------------
# Helpers: generation-aware VMEM budgeting.
# ----------------------------------------------------------------------------
def _vmem_capacity_bytes():
    try:
        cap = getattr(pltpu.get_tpu_info(), "vmem_capacity_bytes", None)
        if cap:
            return int(cap)
    except Exception:
        pass
    return 64 * 1024 * 1024  # conservative fallback (v7x per-TC VMEM)


def _block_budget_bytes(vmem_cap):
    # Target ~1/16 of physical VMEM per block (2 in + 2 out double buffers
    # -> ~1/4 of VMEM total), clamped to the 1-6 MiB sweet spot.
    #   v5e/v6e (128 MiB) -> 6 MiB blocks; v7x (64 MiB) -> 4 MiB blocks.
    return int(min(6 << 20, max(1 << 20, vmem_cap // 16)))


def _vmem_limit_bytes(block_bytes, vmem_cap):
    want = 4 * block_bytes + (8 << 20)  # 2 in + 2 out buffers + scratch headroom
    return int(min((vmem_cap * 3) // 4, max(want, 32 << 20)))


def _round_up(v, m):
    return ((v + m - 1) // m) * m


# ----------------------------------------------------------------------------
# Kernel body (shared by both layouts): square -> mean over `axis` (f32) ->
# rsqrt (EUP) -> scale.  Stats always in f32; for low-precision inputs the
# scale is applied in the input dtype so no full-block f32 temp hits the store.
# ----------------------------------------------------------------------------
def _pixel_norm_kernel(x_ref, o_ref, *, eps, axis):
    x = x_ref[...]
    xf = x.astype(jnp.float32)
    ms = jnp.mean(xf * xf, axis=axis, keepdims=True)
    inv = jax.lax.rsqrt(ms + eps)
    if jnp.dtype(o_ref.dtype).itemsize >= 4:
        o_ref[...] = (xf * inv).astype(o_ref.dtype)
    else:
        o_ref[...] = x * inv.astype(x.dtype)


# ----------------------------------------------------------------------------
# Layout A: (B, C, S) with S >= 128.  Channels on sublanes (XLU reduction),
# spatial on lanes -> lane-dense loads/stores.
# ----------------------------------------------------------------------------
def _ensure_min_steps_a(B, S, bb, t, min_steps=4):
    def steps(bb_, t_):
        return pl.cdiv(B, bb_) * pl.cdiv(S, t_)

    while bb > 1 and steps(bb, t) < min_steps:
        bb = (bb + 1) // 2
    while t > _LANE and steps(bb, t) < min_steps:
        nt = _round_up(pl.cdiv(t, 2), _LANE)
        if nt >= t:
            break
        t = nt
    return bb, t


def _pixel_norm_channels_sublane(x3, eps, budget, vmem_cap):
    B, C, S = (int(d) for d in x3.shape)
    itemsize = jnp.dtype(x3.dtype).itemsize
    col_bytes = max(1, C * itemsize)  # bytes per lane column, one batch row
    max_cols = budget // col_bytes

    if max_cols >= S:
        t = S
        bb = int(max(1, min(B, budget // max(1, C * S * itemsize))))
    elif max_cols >= _LANE:
        t = (max_cols // _LANE) * _LANE
        bb = 1
    else:
        # Very large C: clamp to one lane group; vmem_limit below accounts for
        # the oversized block.
        # TODO(synk): if (C, 128) alone exceeds VMEM, tile the reduction over C
        # with an 'arbitrary' grid axis + accumulator scratch.
        t = min(S, _LANE)
        bb = 1

    bb, t = _ensure_min_steps_a(B, S, bb, t)
    grid = (pl.cdiv(B, bb), pl.cdiv(S, t))
    block_bytes = bb * C * t * itemsize

    cost = pl.CostEstimate(
        flops=3 * B * C * S,
        transcendentals=B * S,
        bytes_accessed=2 * B * C * S * itemsize,
    )

    return pl.pallas_call(
        functools.partial(_pixel_norm_kernel, eps=eps, axis=1),
        out_shape=jax.ShapeDtypeStruct((B, C, S), x3.dtype),
        grid_spec=pltpu.PrefetchScalarGridSpec(
            num_scalar_prefetch=0,
            grid=grid,
            in_specs=[pl.BlockSpec((bb, C, t), lambda i, j: (i, 0, j))],
            out_specs=pl.BlockSpec((bb, C, t), lambda i, j: (i, 0, j)),
        ),
        compiler_params=pltpu.CompilerParams(
            dimension_semantics=("parallel", "parallel"),
            vmem_limit_bytes=_vmem_limit_bytes(block_bytes, vmem_cap),
        ),
        cost_estimate=cost,
    )(x3)


# ----------------------------------------------------------------------------
# Layout B: (R, C) with R = B*S rows, S < 128.  Channels on lanes (lane-dense
# stores, e.g. C = 512 StyleGAN latents); reduction over the last axis.
# ----------------------------------------------------------------------------
def _pixel_norm_channels_lane(x2, eps, budget, vmem_cap):
    R, C = (int(d) for d in x2.shape)
    itemsize = jnp.dtype(x2.dtype).itemsize
    row_bytes = max(1, C * itemsize)
    max_rows = max(1, budget // row_bytes)

    if R <= _SUBLANE:
        tm = R  # full extent (allowed even when not a multiple of 8)
    else:
        tm = max(_SUBLANE, (min(max_rows, R) // _SUBLANE) * _SUBLANE)
        # Megacore: keep at least a few grid steps when there are enough rows.
        while tm > _SUBLANE and pl.cdiv(R, tm) < 4:
            nt = _round_up(pl.cdiv(tm, 2), _SUBLANE)
            if nt >= tm:
                break
            tm = nt

    grid = (pl.cdiv(R, tm),)
    block_bytes = tm * C * itemsize

    cost = pl.CostEstimate(
        flops=3 * R * C,
        transcendentals=R,
        bytes_accessed=2 * R * C * itemsize,
    )

    return pl.pallas_call(
        functools.partial(_pixel_norm_kernel, eps=eps, axis=-1),
        out_shape=jax.ShapeDtypeStruct((R, C), x2.dtype),
        grid_spec=pltpu.PrefetchScalarGridSpec(
            num_scalar_prefetch=0,
            grid=grid,
            in_specs=[pl.BlockSpec((tm, C), lambda i: (i, 0))],
            out_specs=pl.BlockSpec((tm, C), lambda i: (i, 0)),
        ),
        compiler_params=pltpu.CompilerParams(
            dimension_semantics=("parallel",),
            vmem_limit_bytes=_vmem_limit_bytes(block_bytes, vmem_cap),
        ),
        cost_estimate=cost,
    )(x2)


# ----------------------------------------------------------------------------
# Wrapper: PixelNorm over dim=1 of a (B, C, *spatial) tensor.
# ----------------------------------------------------------------------------
def pixel_norm(x, *, eps=1e-8):
    orig_shape = x.shape
    if x.ndim < 2:
        raise ValueError("PixelNorm expects at least (B, C) input")
    B, C = int(orig_shape[0]), int(orig_shape[1])
    S = int(np.prod(orig_shape[2:], dtype=np.int64)) if x.ndim > 2 else 1

    vmem_cap = _vmem_capacity_bytes()
    budget = _block_budget_bytes(vmem_cap)

    if S >= _LANE:
        out = _pixel_norm_channels_sublane(x.reshape(B, C, S), eps, budget, vmem_cap)
        return out.reshape(orig_shape)

    # Small spatial extent: present a lane-dense (B*S, C) slab instead of
    # leaving < 128 elements on lanes (masked partial stores).  The wrapper
    # transpose is layout plumbing; the kernel stays one fused pass.
    if x.ndim == 2:
        return _pixel_norm_channels_lane(x, eps, budget, vmem_cap)

    x2 = jnp.moveaxis(x.reshape(B, C, S), 1, 2).reshape(B * S, C)
    out2 = _pixel_norm_channels_lane(x2, eps, budget, vmem_cap)
    return jnp.moveaxis(out2.reshape(B, S, C), 2, 1).reshape(orig_shape)


# Plain-JAX reference (matches the PyTorch module exactly).
def pixel_norm_ref(x, *, eps=1e-8):
    return x / jnp.sqrt(jnp.mean(x * x, axis=1, keepdims=True) + eps)


if __name__ == "__main__":
    key = jax.random.PRNGKey(0)
    k1, k2, k3, k4, k5 = jax.random.split(key, 5)
    run = jax.jit(pixel_norm)

    # 1) Typical small NCHW feature map (layout A: channels on sublanes).
    x_a = jax.random.normal(k1, (2, 4, 16, 16), jnp.float32)
    out_a = jax.block_until_ready(run(x_a))
    np.testing.assert_allclose(np.asarray(out_a), np.asarray(pixel_norm_ref(x_a)),
                               rtol=1e-4, atol=1e-5)
    assert out_a.shape == x_a.shape

    # 2) Larger map exercising cdiv tiling / batch+spatial grid (layout A).
    x_b = jax.random.normal(k2, (2, 256, 64, 64), jnp.float32)
    out_b = jax.block_until_ready(run(x_b))
    np.testing.assert_allclose(np.asarray(out_b), np.asarray(pixel_norm_ref(x_b)),
                               rtol=1e-4, atol=1e-5)

    # 3) StyleGAN-style latent (B, C): S = 1 -> lane-dense layout B.
    x_c = jax.random.normal(k3, (2, 512), jnp.float32)
    out_c = jax.block_until_ready(run(x_c))
    np.testing.assert_allclose(np.asarray(out_c), np.asarray(pixel_norm_ref(x_c)),
                               rtol=1e-4, atol=1e-5)

    # 4) Tiny 4x4 feature map: S < 128 -> lane-dense layout B with transpose.
    x_d = jax.random.normal(k4, (2, 8, 4, 4), jnp.float32)
    out_d = jax.block_until_ready(run(x_d))
    np.testing.assert_allclose(np.asarray(out_d), np.asarray(pixel_norm_ref(x_d)),
                               rtol=1e-4, atol=1e-5)

    # 5) bf16 input: stats in f32, scale applied in bf16 (no f32 block temp).
    x_e = jax.random.normal(k5, (2, 16, 32, 32), jnp.float32).astype(jnp.bfloat16)
    out_e = jax.block_until_ready(run(x_e))
    ref_e = pixel_norm_ref(x_e.astype(jnp.float32))
    np.testing.assert_allclose(np.asarray(out_e).astype(np.float32),
                               np.asarray(ref_e), rtol=3e-2, atol=3e-2)

    print("KERNEL_OK")
</pallas_src>

<mosaic_0001>
module attributes {stable_mosaic.version = 11 : i64} {
  func.func @_pixel_norm_kernel(%arg0: i32, %arg1: i32, %arg2: memref<1x4x128xf32, #tpu.memory_space<vmem>>, %arg3: memref<1x4x128xf32, #tpu.memory_space<vmem>>) attributes {dimension_semantics = [#tpu.dimension_semantics<parallel>, #tpu.dimension_semantics<parallel>], iteration_bounds = array<i64: 2, 2>, scalar_prefetch = 0 : i64, scratch_operands = 0 : i64, tpu.core_type = #tpu.core_type<tc>, window_params = [{transform_indices = @transform_0, window_bounds = array<i64: 1, 4, 128>}, {transform_indices = @transform_1, window_bounds = array<i64: 1, 4, 128>}]} {
    %c0 = arith.constant 0 : index
    %c0_0 = arith.constant 0 : index
    %c0_1 = arith.constant 0 : index
    %0 = vector.load %arg2[%c0, %c0_0, %c0_1] : memref<1x4x128xf32, #tpu.memory_space<vmem>>, vector<1x4x128xf32>
    %1 = arith.mulf %0, %0 : vector<1x4x128xf32>
    %cst = arith.constant dense<0.000000e+00> : vector<1x128xf32>
    %2 = vector.multi_reduction <add>, %1, %cst [1] : vector<1x4x128xf32> to vector<1x128xf32>
    %3 = vector.shape_cast %2 : vector<1x128xf32> to vector<1x1x128xf32>
    %cst_2 = arith.constant 4.000000e+00 : f32
    %4 = vector.broadcast %cst_2 : f32 to vector<1x1x128xf32>
    %5 = arith.divf %3, %4 : vector<1x1x128xf32>
    %cst_3 = arith.constant 9.99999993E-9 : f32
    %6 = vector.broadcast %cst_3 : f32 to vector<1x1x128xf32>
    %7 = arith.addf %5, %6 : vector<1x1x128xf32>
    %8 = math.rsqrt %7 : vector<1x1x128xf32>
    %9 = vector.broadcast %8 : vector<1x1x128xf32> to vector<1x4x128xf32>
    %10 = arith.mulf %0, %9 : vector<1x4x128xf32>
    %c0_4 = arith.constant 0 : index
    %c0_5 = arith.constant 0 : index
    %c0_6 = arith.constant 0 : index
    %11 = vector.load %arg3[%c0_4, %c0_5, %c0_6] : memref<1x4x128xf32, #tpu.memory_space<vmem>>, vector<1x4x128xf32>
    tpu.vector_store %arg3[%c0_4, %c0_5, %c0_6], %10 {strides = array<i32>} : memref<1x4x128xf32, #tpu.memory_space<vmem>>, vector<1x4x128xf32>,
    return
  }
  func.func @transform_0(%arg0: i32, %arg1: i32) -> (i32, i32, i32) {
    %c0_i32 = arith.constant 0 : i32
    %c0_i32_0 = arith.constant 0 : i32
    return %arg0, %c0_i32, %arg1 : i32, i32, i32
  }
  func.func @transform_1(%arg0: i32, %arg1: i32) -> (i32, i32, i32) {
    %c0_i32 = arith.constant 0 : i32
    %c0_i32_0 = arith.constant 0 : i32
    return %arg0, %c0_i32, %arg1 : i32, i32, i32
  }
}

</mosaic_0001>

<llo_original>
// kernel: pixel_norm.1
$region0: #{pixel_norm.1}
  #allocation0 [shape = 'u32[]', space=smem, size = 0x4, offset = 0x4, fixed_abs, tag = 'smem constant byte address 0x4 - core index']
  #allocation1 [shape = 'u32[144,128]{1,0:T(1,128)}', space=vmem, size = 0x12000, scoped, tag = 'internal scratch']
  %s0 = inlined_call_operand.vmem [shape: f32[2,4,256], index: 0, kind: input, shape index: {}]
  %s1 = inlined_call_operand.vmem [shape: f32[2,4,256], index: 1, kind: output, shape index: {}]
  %s2 = sld [smem:[#allocation0]]
  $region37: #{pixel_norm.1} parent=0
    _
  %s4 = ssub.s32 1, %s2
  %s5 = scalar_select 0, %s4, %s2
  loop: start=0, step=1, limit=6
  $region2: #{pixel_norm.1} parent=0 // loop_pre_header
    _
  $region3: #{pixel_norm.1} parent=0 // loop_header
    %s7 = sphi 0, %s11
    %p8 = scmp.ge.s32.totalorder %s7, 6
    %s14 = sphi 0, %s26
    %s15 = sphi 0, %s22
    %s16 = sphi 0, %s14
    %s17 = sphi 0, %s15
    %s18 = sphi 0, %s16
    %s19 = sphi 0, %s17
    %s31 = sphi 0, %s33
    %s34 = sphi 0, %s31
    %s35 = sphi 0, %s34
    %s51 = sphi 0, %s35
    %s59 = sphi 0, %s61
    %s62 = sphi 0, %s59
    %s63 = sphi 0, %s62
    %s79 = sphi 0, %s63
  $region4: #{pixel_norm.1} parent=0 // loop_header_branch
    %10 = sbr.rel (%p8) target = $region8
  $region5: #{pixel_norm.1} parent=0 // loop_body
    %s12 = ssub.s32 %s7, 1
    %s13 = ssub.s32 %s7, 2
    %s20 = sadd.s32 1, %s15
    %p21 = scmp.ge.s32.totalorder %s20, 2
    %s22 = scalar_select %p21, 0, %s20
    %s23 = sadd.s32 1, %s14
    %s24 = scalar_select %p21, %s23, %s14
    %p25 = scmp.ge.s32.totalorder %s24, 2
    %s26 = scalar_select %p25, 0, %s24
    %s27 = ssub.s32 %s14, %s26
    %s28 = ssub.s32 %s15, %s22
    %s29 = sor.u32 %s27, %s28
    %p30 = scmp.eq.s32.totalorder %s29, 0
    %s32 = sadd.s32 %s31, 1
    %s33 = scalar_select %p30, %s31, %s32
    %p36 = pneg %p30
    %p37 = scmp.eq.s32.totalorder %s7, 3
    %p38 = por %p36, %p37
    %p39 = scmp.ne.s32.totalorder %s31, %s34
    %p40 = scmp.eq.s32.totalorder %s7, 0
    %p41 = por %p39, %p40
    %p42 = scmp.ne.s32.totalorder %s31, %s34
    %p43 = scmp.eq.s32.totalorder %s12, 3
    %p44 = por %p42, %p43
    %p45 = scmp.ne.s32.totalorder %s34, %s35
    %p46 = scmp.eq.s32.totalorder %s12, 0
    %p47 = por %p45, %p46
    %p48 = scmp.ne.s32.totalorder %s34, %s35
    %p49 = scmp.eq.s32.totalorder %s13, 3
    %p50 = por %p48, %p49
    %p52 = scmp.ne.s32.totalorder %s35, %s51
    %p53 = scmp.eq.s32.totalorder %s13, 0
    %p54 = por %p52, %p53
    %s55 = ssub.s32 %s14, %s26
    %s56 = ssub.s32 %s15, %s22
    %s57 = sor.u32 %s55, %s56
    %p58 = scmp.eq.s32.totalorder %s57, 0
    %s60 = sadd.s32 %s59, 1
    %s61 = scalar_select %p58, %s59, %s60
    %p64 = pneg %p58
    %p65 = scmp.eq.s32.totalorder %s7, 3
    %p66 = por %p64, %p65
    %p67 = scmp.ne.s32.totalorder %s59, %s62
    %p68 = scmp.eq.s32.totalorder %s7, 0
    %p69 = por %p67, %p68
    %p70 = scmp.ne.s32.totalorder %s59, %s62
    %p71 = scmp.eq.s32.totalorder %s12, 3
    %p72 = por %p70, %p71
    %p73 = scmp.ne.s32.totalorder %s62, %s63
    %p74 = scmp.eq.s32.totalorder %s12, 0
    %p75 = por %p73, %p74
    %p76 = scmp.ne.s32.totalorder %s62, %s63
    %p77 = scmp.eq.s32.totalorder %s13, 3
    %p78 = por %p76, %p77
    %p80 = scmp.ne.s32.totalorder %s63, %s79
    %p81 = scmp.eq.s32.totalorder %s13, 0
    %p82 = por %p80, %p81
    %p83 = scmp.le.s32.totalorder 1, %s7
    %p84 = scmp.lt.s32.totalorder %s7, 5
    %p85 = pnand %p83, %p84
    %p86 = pneg %p85
    // Predicated region
    $region9: #{pixel_norm.1} parent=5 // pred_check
      _
    $region10: #{pixel_norm.1} parent=5 // pred_check_branch
      %88 = sbr.rel (%p85) target = $region12
    $region11: #{pixel_norm.1} parent=5 // pred_region
      %s89 = ssub.s32 %s7, 1
    $region12: #{pixel_norm.1} parent=5 // pred_fallthru
      _
    %p90 = scmp.lt.s32.totalorder %s7, 4
    // Predicated region
    $region13: #{pixel_norm.1} parent=5 // pred_check
      %p91 = pneg %p90
    $region14: #{pixel_norm.1} parent=5 // pred_check_branch
      %93 = sbr.rel (%p91) target = $region16
    $region15: #{pixel_norm.1} parent=5 // pred_region
      // Predicated region
      $region17: #{pixel_norm.1} parent=15 // pred_check
        %p94 = pneg %p41
      $region18: #{pixel_norm.1} parent=15 // pred_check_branch
        %96 = sbr.rel (%p94) target = $region20
      $region19: #{pixel_norm.1} parent=15 // pred_region
        %p97 = scmp.lt.s32.totalorder %s14, 1
        %s98 = scalar_select %p97, %s14, 1
        %p99 = scmp.lt.s32.totalorder %s15, 1
        %s100 = scalar_select %p99, %s15, 1
        %s101 = smul.addr %s98, 2
        %s102 = sadd.s32 %s100, %s101
        %s103 = smul.addr %s102, 4
        %s104 = scalar_lea.vmem %s0, %s103
      $region20: #{pixel_norm.1} parent=15 // pred_fallthru
        _
    $region16: #{pixel_norm.1} parent=5 // pred_fallthru
      _
    %p105 = scmp.le.s32.totalorder 1, %s7
    %p106 = scmp.lt.s32.totalorder %s7, 5
    %p107 = pnand %p105, %p106
    %p108 = pneg %p107
    // Predicated region
    $region21: #{pixel_norm.1} parent=5 // pred_check
      _
    $region22: #{pixel_norm.1} parent=5 // pred_check_branch
      %110 = sbr.rel (%p107) target = $region24
    $region23: #{pixel_norm.1} parent=5 // pred_region
      %s111 = ssub.s32 %s7, 1
      %p112 = scmp.lt.s32.totalorder %s16, 1
      %s113 = scalar_select %p112, %s16, 1
      %p114 = scmp.lt.s32.totalorder %s17, 1
      %s115 = scalar_select %p114, %s17, 1
      %s116 = smul.addr %s113, 2
      %s117 = sadd.s32 %s115, %s116
      %s118 = smul.addr %s117, 4
      %s119 = scalar_lea.vmem %s0, %s118
      %p120 = pneg %p47
      %p121 = pneg %p44
      %p122 = pneg %p75
      %p123 = pneg %p72
      %p124 = scmp.lt.s32.totalorder %s16, 1
      %s125 = scalar_select %p124, %s16, 1
      %p126 = scmp.lt.s32.totalorder %s17, 1
      %s127 = scalar_select %p126, %s17, 1
      %s128 = smul.addr %s125, 2
      %s129 = sadd.s32 %s127, %s128
      %s130 = smul.addr %s129, 4
      %s131 = scalar_lea.vmem %s1, %s130
      %p132 = scmp.lt.s32.totalorder %s16, 1
      %s133 = scalar_select %p132, %s16, 1
      %p134 = scmp.lt.s32.totalorder %s17, 1
      %s135 = scalar_select %p134, %s17, 1
      %s136 = smul.addr %s133, 2
      %s137 = sadd.s32 %s135, %s136
      %s138 = smul.addr %s137, 4
      %s139 = scalar_lea.vmem %s0, %s138
      %p140 = scmp.lt.s32.totalorder %s16, 1
      %s141 = scalar_select %p140, %s16, 1
      %p142 = scmp.lt.s32.totalorder %s17, 1
      %s143 = scalar_select %p142, %s17, 1
      %s144 = smul.addr %s141, 2
      %s145 = sadd.s32 %s143, %s144
      %s146 = smul.addr %s145, 4
      %s147 = scalar_lea.vmem %s1, %s146
      %v148 = vld [vmem:[%s139] sm:$0xf]
      %v149 = vmul.f32 %v148, %v148
      %vm150 = vcmask 1043456
      %v151 = vsel %vm150, %v149, 0.0
      %v152 = vrot.slane %v151, 4
      %v153 = vadd.f32 %v151, %v152
      %v154 = vrot.slane %v153, 2
      %v155 = vadd.f32 %v153, %v154
      %v156 = vrot.slane %v155, 1
      %v157 = vadd.f32 %v155, %v156
      %v158 = vrcp.pop 4.0
      %v159 = vmul.f32 %v157, %v158
      %v160 = vadd.f32 %v159, 1e-08
      %v161 = vrsqrt.pop %v160
      %v162 = vmul.f32 %v148, %v161
      %163 = vst [vmem:[%s147] sm:$0xf] %v162
      %p164 = scmp.lt.s32.totalorder %s16, 1
      %s165 = scalar_select %p164, %s16, 1
      %p166 = scmp.lt.s32.totalorder %s17, 1
      %s167 = scalar_select %p166, %s17, 1
      %s168 = smul.addr %s165, 2
      %s169 = sadd.s32 %s167, %s168
      %s170 = smul.addr %s169, 4
      %s171 = scalar_lea.vmem %s1, %s170
      // Predicated region
      $region25: #{pixel_norm.1} parent=23 // pred_check
        %p172 = pneg %p72
      $region26: #{pixel_norm.1} parent=23 // pred_check_branch
        %174 = sbr.rel (%p172) target = $region28
      $region27: #{pixel_norm.1} parent=23 // pred_region
        _
      $region28: #{pixel_norm.1} parent=23 // pred_fallthru
        _
    $region24: #{pixel_norm.1} parent=5 // pred_fallthru
      _
    %p175 = scmp.le.s32.totalorder 2, %s7
    // Predicated region
    $region29: #{pixel_norm.1} parent=5 // pred_check
      %p176 = pneg %p175
    $region30: #{pixel_norm.1} parent=5 // pred_check_branch
      %178 = sbr.rel (%p176) target = $region32
    $region31: #{pixel_norm.1} parent=5 // pred_region
      %s179 = ssub.s32 %s7, 2
      // Predicated region
      $region33: #{pixel_norm.1} parent=31 // pred_check
        %p180 = pneg %p78
      $region34: #{pixel_norm.1} parent=31 // pred_check_branch
        %182 = sbr.rel (%p180) target = $region36
      $region35: #{pixel_norm.1} parent=31 // pred_region
        %p183 = scmp.lt.s32.totalorder %s18, 1
        %s184 = scalar_select %p183, %s18, 1
        %p185 = scmp.lt.s32.totalorder %s19, 1
        %s186 = scalar_select %p185, %s19, 1
        %s187 = smul.addr %s184, 2
        %s188 = sadd.s32 %s186, %s187
        %s189 = smul.addr %s188, 4
        %s190 = scalar_lea.vmem %s1, %s189
      $region36: #{pixel_norm.1} parent=31 // pred_fallthru
        _
    $region32: #{pixel_norm.1} parent=5 // pred_fallthru
      _
  $region6: #{pixel_norm.1} parent=0 // loop_footer
    %s11 = sadd.s32 1, %s7
  $region7: #{pixel_norm.1} parent=0 // loop_footer_branch
    %6 = sbr.rel target = $region3
  $region8: #{pixel_norm.1} parent=0 // loop_exit
    _

</llo_original>
